<compile_context>
chip_gen: v7x
topology: tpu7x:2x2x1
jax: 0.10.0
libtpu: 0.0.40
codegen_flags: <defaults>
</compile_context>

<pallas_src>
import functools

import jax
import jax.numpy as jnp
from jax import lax
from jax.experimental import pallas as pl
from jax.experimental.pallas import tpu as pltpu

PRECISION = 1e-05


def _round_up(a, m):
    return (a + m - 1) // m * m


def _nn4et_kernel(x_ref, w0_ref, prcp_ref, pet_ref, k_ref,
                  w1t_ref, b1_ref, w2t_ref, b2_ref, et_ref, *, batch):
    tb = et_ref.shape[1]

    # --- SimpleAnn forward, batch on the lane axis of the result -------------
    # h = relu(W1^T @ x^T + b1) : contract x's feature dim (last) against
    # W1^T's last dim -> (H, tb).  x arrives in native (tb, nx) layout; the
    # transpose is done on-chip by the MXU/XLU, not by a wrapper copy.
    h = lax.dot_general(
        w1t_ref[...], x_ref[...],
        dimension_numbers=(((1,), (1,)), ((), ())),
        preferred_element_type=jnp.float32)
    h = jnp.maximum(h + b1_ref[...], 0.0)

    # y = W2^T @ h + b2 : (1, tb), lane-dense.
    y = jnp.dot(w2t_ref[...], h, preferred_element_type=jnp.float32) + b2_ref[0, 0]

    # --- ET constraint (masked clamp) ----------------------------------------
    wp = w0_ref[...] + prcp_ref[...]
    upper = jnp.minimum(wp, k_ref[...] * pet_ref[...])
    # torch.clamp(z, min=0, max=upper) == min(max(z, 0), upper)
    clamped = jnp.minimum(jnp.maximum(y, 0.0), upper)

    # Lane-validity mask replaces host-side padding for the ragged last block.
    lane = pl.program_id(0) * tb + lax.broadcasted_iota(jnp.int32, (1, tb), 1)
    keep = jnp.logical_and(lane < batch, wp > PRECISION)
    et_ref[...] = jnp.where(keep, clamped, 0.0).astype(et_ref.dtype)


def nn_module4hydro_forward(x, params, w0, prcp, pet, k, *, tile_b=16384):
    """x: (B, nx); w0/prcp/pet/k: (B,). Returns et: (B,) float32."""
    w1, b1, w2, b2 = params
    B, nx = x.shape
    H = w1.shape[1]
    f32 = jnp.float32

    # Tile selection: tiles are multiples of 128 lanes (or the full batch for
    # tiny inputs).  Once the batch is big enough, force >=2 blocks so the
    # "parallel" grid axis shards across both TensorCores on v7x.
    if B <= 256:
        tb = B
    else:
        tb = max(128, min(int(tile_b), _round_up(pl.cdiv(B, 2), 128)))
    n_blocks = pl.cdiv(B, tb)

    # Free, no-copy restaging: native-layout x, (1, B) views of the hydro vecs.
    x = jnp.asarray(x, f32)
    w0r = jnp.reshape(jnp.asarray(w0, f32), (1, B))
    prcpr = jnp.reshape(jnp.asarray(prcp, f32), (1, B))
    petr = jnp.reshape(jnp.asarray(pet, f32), (1, B))
    kr = jnp.reshape(jnp.asarray(k, f32), (1, B))
    w1t = jnp.transpose(jnp.asarray(w1, f32))           # (H, nx)  tiny, resident
    b1c = jnp.reshape(jnp.asarray(b1, f32), (H, 1))     # (H, 1)
    w2t = jnp.reshape(jnp.asarray(w2, f32), (H, 1)).T   # (1, H)
    b2s = jnp.reshape(jnp.asarray(b2, f32), (1, 1))     # SMEM scalar

    # VMEM budget (f32, double-buffered inputs, lane/sublane-padded tiles);
    # keep <= 48 MiB so the same default works on v7x's 64 MiB VMEM.
    lane_tb = _round_up(tb, 128)
    vmem_est = (
        _round_up(tb, 8) * _round_up(nx, 128) * 4 * 2        # x tile (lane-padded)
        + 4 * 8 * lane_tb * 4 * 2                            # w0/prcp/pet/k tiles
        + 8 * lane_tb * 4 * 2                                 # et tile
        + _round_up(H, 8) * lane_tb * 4                       # h intermediate
        + _round_up(nx, 8) * lane_tb * 4                      # on-chip x^T relayout
        + (_round_up(H, 8) * 128 + 2 * 8 * 128) * 4 * 2)      # weights / biases
    vmem_limit = int(min(max(vmem_est + (8 << 20), 16 << 20), 48 << 20))

    cost = pl.CostEstimate(
        flops=2 * B * H * (nx + 1),
        transcendentals=0,
        bytes_accessed=B * (nx + 5) * 4 + (H * nx + 2 * H + 1) * 4,
    )

    kernel = functools.partial(_nn4et_kernel, batch=B)
    et_row = pl.pallas_call(
        kernel,
        out_shape=jax.ShapeDtypeStruct((1, B), f32),
        grid_spec=pl.GridSpec(
            grid=(n_blocks,),
            in_specs=[
                pl.BlockSpec((tb, nx), lambda i: (i, 0)),            # x, native rows
                pl.BlockSpec((1, tb), lambda i: (0, i)),             # w0
                pl.BlockSpec((1, tb), lambda i: (0, i)),             # prcp
                pl.BlockSpec((1, tb), lambda i: (0, i)),             # pet
                pl.BlockSpec((1, tb), lambda i: (0, i)),             # k
                pl.BlockSpec((H, nx), lambda i: (0, 0)),             # W1^T (resident)
                pl.BlockSpec((H, 1), lambda i: (0, 0)),              # b1   (resident)
                pl.BlockSpec((1, H), lambda i: (0, 0)),              # W2^T (resident)
                pl.BlockSpec(memory_space=pltpu.MemorySpace.SMEM),   # b2 scalar
            ],
            out_specs=pl.BlockSpec((1, tb), lambda i: (0, i)),       # lane-dense et
        ),
        compiler_params=pltpu.CompilerParams(
            dimension_semantics=("parallel",),
            vmem_limit_bytes=vmem_limit),
        cost_estimate=cost,
    )(x, w0r, prcpr, petr, kr, w1t, b1c, w2t, b2s)
    return jnp.reshape(et_row, (B,))


def _reference(x, params, w0, prcp, pet, k):
    w1, b1, w2, b2 = params
    h = jnp.maximum(x @ w1 + jnp.reshape(b1, (1, -1)), 0.0)
    z = (h @ jnp.reshape(w2, (-1, 1)) + jnp.reshape(b2, ())).reshape(-1)
    wp = w0 + prcp
    mask = wp > PRECISION
    upper = jnp.minimum(wp, k * pet)
    clamped = jnp.minimum(jnp.maximum(z, 0.0), upper)
    return jnp.where(mask, clamped, 0.0)


def _make_inputs(key, B, NX, HIDDEN, NY=1):
    kx, kw1, kb1, kw2, kb2, kw0, kp, kpet, kk = jax.random.split(key, 9)
    x = jax.random.normal(kx, (B, NX), dtype=jnp.float32)
    w1 = jax.random.normal(kw1, (NX, HIDDEN), dtype=jnp.float32) * 0.2
    b1 = jax.random.normal(kb1, (1, HIDDEN), dtype=jnp.float32) * 0.05
    w2 = jax.random.normal(kw2, (HIDDEN, NY), dtype=jnp.float32) * 0.2
    b2 = jax.random.normal(kb2, (1, NY), dtype=jnp.float32) * 0.05
    params = (w1, b1, w2, b2)
    w0 = jnp.abs(jax.random.normal(kw0, (B,), dtype=jnp.float32)) * 2.0
    w0 = w0.at[0].set(0.0)
    prcp = jnp.abs(jax.random.normal(kp, (B,), dtype=jnp.float32))
    prcp = prcp.at[0].set(0.0)          # mask False for element 0
    pet = jnp.abs(jax.random.normal(kpet, (B,), dtype=jnp.float32))
    k = jnp.abs(jax.random.normal(kk, (B,), dtype=jnp.float32))
    return x, params, w0, prcp, pet, k


if __name__ == "__main__":
    key = jax.random.PRNGKey(0)
    k1, k2, k3 = jax.random.split(key, 3)

    # 1) Small single-block case (B=8, nx=16, H=32): full-array block shapes.
    x, params, w0, prcp, pet, k = _make_inputs(k1, B=8, NX=16, HIDDEN=32)
    et = jax.block_until_ready(nn_module4hydro_forward(x, params, w0, prcp, pet, k))
    ref = _reference(x, params, w0, prcp, pet, k)
    assert et.shape == (8,)
    assert jnp.allclose(et, ref, atol=1e-5, rtol=1e-5), (et, ref)

    # 2) Two-block case with a ragged last block (B=300 -> tb=256, 2 blocks):
    #    exercises the in-kernel lane mask (no host-side padding).
    x, params, w0, prcp, pet, k = _make_inputs(k2, B=300, NX=16, HIDDEN=32)
    et = jax.block_until_ready(nn_module4hydro_forward(x, params, w0, prcp, pet, k))
    ref = _reference(x, params, w0, prcp, pet, k)
    assert et.shape == (300,)
    assert jnp.allclose(et, ref, atol=1e-5, rtol=1e-5)

    # 3) Multi-block case with a small explicit tile (B=1000, tile_b=128 -> 8
    #    blocks, last one ragged): exercises the real grid + parallel axis.
    x, params, w0, prcp, pet, k = _make_inputs(k3, B=1000, NX=16, HIDDEN=32)
    et = jax.block_until_ready(
        nn_module4hydro_forward(x, params, w0, prcp, pet, k, tile_b=128))
    ref = _reference(x, params, w0, prcp, pet, k)
    assert et.shape == (1000,)
    assert jnp.allclose(et, ref, atol=1e-5, rtol=1e-5)

    print("KERNEL_OK")
</pallas_src>

<mosaic_0001>
module attributes {stable_mosaic.version = 11 : i64} {
  func.func @_nn4et_kernel(%arg0: i32, %arg1: memref<8x16xf32, #tpu.memory_space<vmem>>, %arg2: memref<1x8xf32, #tpu.memory_space<vmem>>, %arg3: memref<1x8xf32, #tpu.memory_space<vmem>>, %arg4: memref<1x8xf32, #tpu.memory_space<vmem>>, %arg5: memref<1x8xf32, #tpu.memory_space<vmem>>, %arg6: memref<32x16xf32, #tpu.memory_space<vmem>>, %arg7: memref<32x1xf32, #tpu.memory_space<vmem>>, %arg8: memref<1x32xf32, #tpu.memory_space<vmem>>, %arg9: memref<1x1xf32, #tpu.memory_space<smem>>, %arg10: memref<1x8xf32, #tpu.memory_space<vmem>>) attributes {dimension_semantics = [#tpu.dimension_semantics<parallel>], iteration_bounds = array<i64: 1>, scalar_prefetch = 0 : i64, scratch_operands = 0 : i64, tpu.core_type = #tpu.core_type<tc>, window_params = [{transform_indices = @transform_0, window_bounds = array<i64: 8, 16>}, {transform_indices = @transform_1, window_bounds = array<i64: 1, 8>}, {transform_indices = @transform_2, window_bounds = array<i64: 1, 8>}, {transform_indices = @transform_3, window_bounds = array<i64: 1, 8>}, {transform_indices = @transform_4, window_bounds = array<i64: 1, 8>}, {pipeline_mode = #tpu.pipeline_mode<synchronous>, transform_indices = @transform_5, window_bounds = array<i64: 32, 16>}, {pipeline_mode = #tpu.pipeline_mode<synchronous>, transform_indices = @transform_6, window_bounds = array<i64: 32, 1>}, {pipeline_mode = #tpu.pipeline_mode<synchronous>, transform_indices = @transform_7, window_bounds = array<i64: 1, 32>}, {transform_indices = @transform_8, window_bounds = array<i64: 1, 1>}, {transform_indices = @transform_9, window_bounds = array<i64: 1, 8>}]} {
    %c0 = arith.constant 0 : index
    %c0_0 = arith.constant 0 : index
    %0 = vector.load %arg6[%c0, %c0_0] : memref<32x16xf32, #tpu.memory_space<vmem>>, vector<32x16xf32>
    %c0_1 = arith.constant 0 : index
    %c0_2 = arith.constant 0 : index
    %1 = vector.load %arg1[%c0_1, %c0_2] : memref<8x16xf32, #tpu.memory_space<vmem>>, vector<8x16xf32>
    %cst = arith.constant dense<0.000000e+00> : vector<32x8xf32>
    %2 = tpu.matmul %0, %1, %cst {dimension_numbers = #tpu.dot_dimension_numbers<[1], [1], [0], [0], [0, 0, 1, 0], [], []>} : vector<32x16xf32>, vector<8x16xf32>, vector<32x8xf32> -> vector<32x8xf32>
    %c0_3 = arith.constant 0 : index
    %c0_4 = arith.constant 0 : index
    %3 = vector.load %arg7[%c0_3, %c0_4] : memref<32x1xf32, #tpu.memory_space<vmem>>, vector<32x1xf32>
    %4 = vector.broadcast %3 : vector<32x1xf32> to vector<32x8xf32>
    %5 = arith.addf %2, %4 : vector<32x8xf32>
    %cst_5 = arith.constant 0.000000e+00 : f32
    %6 = vector.broadcast %cst_5 : f32 to vector<32x8xf32>
    %7 = arith.maximumf %5, %6 : vector<32x8xf32>
    %c0_6 = arith.constant 0 : index
    %c0_7 = arith.constant 0 : index
    %8 = vector.load %arg8[%c0_6, %c0_7] : memref<1x32xf32, #tpu.memory_space<vmem>>, vector<1x32xf32>
    %cst_8 = arith.constant dense<0.000000e+00> : vector<1x8xf32>
    %9 = tpu.matmul %8, %7, %cst_8 {dimension_numbers = #tpu.dot_dimension_numbers<[1], [0], [0], [1], [0, 0, 1, 1], [], []>} : vector<1x32xf32>, vector<32x8xf32>, vector<1x8xf32> -> vector<1x8xf32>
    %c0_9 = arith.constant 0 : index
    %c0_10 = arith.constant 0 : index
    %10 = memref.load %arg9[%c0_9, %c0_10] : memref<1x1xf32, #tpu.memory_space<smem>>
    %11 = vector.broadcast %10 : f32 to vector<1x8xf32>
    %12 = arith.addf %9, %11 : vector<1x8xf32>
    %c0_11 = arith.constant 0 : index
    %c0_12 = arith.constant 0 : index
    %13 = vector.load %arg2[%c0_11, %c0_12] : memref<1x8xf32, #tpu.memory_space<vmem>>, vector<1x8xf32>
    %c0_13 = arith.constant 0 : index
    %c0_14 = arith.constant 0 : index
    %14 = vector.load %arg3[%c0_13, %c0_14] : memref<1x8xf32, #tpu.memory_space<vmem>>, vector<1x8xf32>
    %15 = arith.addf %13, %14 : vector<1x8xf32>
    %c0_15 = arith.constant 0 : index
    %c0_16 = arith.constant 0 : index
    %16 = vector.load %arg5[%c0_15, %c0_16] : memref<1x8xf32, #tpu.memory_space<vmem>>, vector<1x8xf32>
    %c0_17 = arith.constant 0 : index
    %c0_18 = arith.constant 0 : index
    %17 = vector.load %arg4[%c0_17, %c0_18] : memref<1x8xf32, #tpu.memory_space<vmem>>, vector<1x8xf32>
    %18 = arith.mulf %16, %17 : vector<1x8xf32>
    %19 = arith.minimumf %15, %18 : vector<1x8xf32>
    %cst_19 = arith.constant 0.000000e+00 : f32
    %20 = vector.broadcast %cst_19 : f32 to vector<1x8xf32>
    %21 = arith.maximumf %12, %20 : vector<1x8xf32>
    %22 = arith.minimumf %21, %19 : vector<1x8xf32>
    %c8_i32 = arith.constant 8 : i32
    %23 = arith.muli %arg0, %c8_i32 : i32
    %24 = tpu.iota {dimensions = array<i32: 1>} : vector<1x8xi32>
    %25 = vector.broadcast %23 : i32 to vector<1x8xi32>
    %26 = arith.addi %25, %24 : vector<1x8xi32>
    %c8_i32_20 = arith.constant 8 : i32
    %27 = vector.broadcast %c8_i32_20 : i32 to vector<1x8xi32>
    %28 = arith.cmpi slt, %26, %27 : vector<1x8xi32>
    %cst_21 = arith.constant 9.99999974E-6 : f32
    %29 = vector.broadcast %cst_21 : f32 to vector<1x8xf32>
    %30 = arith.cmpf ogt, %15, %29 : vector<1x8xf32>
    %31 = arith.andi %28, %30 : vector<1x8xi1>
    %cst_22 = arith.constant 0.000000e+00 : f32
    %32 = vector.broadcast %cst_22 : f32 to vector<1x8xf32>
    %33 = arith.select %31, %22, %32 : vector<1x8xi1>, vector<1x8xf32>
    %c0_23 = arith.constant 0 : index
    %c0_24 = arith.constant 0 : index
    %34 = vector.load %arg10[%c0_23, %c0_24] : memref<1x8xf32, #tpu.memory_space<vmem>>, vector<1x8xf32>
    tpu.vector_store %arg10[%c0_23, %c0_24], %33 {strides = array<i32>} : memref<1x8xf32, #tpu.memory_space<vmem>>, vector<1x8xf32>,
    return
  }
  func.func @transform_0(%arg0: i32) -> (i32, i32) {
    %c0_i32 = arith.constant 0 : i32
    %c0_i32_0 = arith.constant 0 : i32
    return %arg0, %c0_i32 : i32, i32
  }
  func.func @transform_1(%arg0: i32) -> (i32, i32) {
    %c0_i32 = arith.constant 0 : i32
    %c0_i32_0 = arith.constant 0 : i32
    return %c0_i32, %arg0 : i32, i32
  }
  func.func @transform_2(%arg0: i32) -> (i32, i32) {
    %c0_i32 = arith.constant 0 : i32
    %c0_i32_0 = arith.constant 0 : i32
    return %c0_i32, %arg0 : i32, i32
  }
  func.func @transform_3(%arg0: i32) -> (i32, i32) {
    %c0_i32 = arith.constant 0 : i32
    %c0_i32_0 = arith.constant 0 : i32
    return %c0_i32, %arg0 : i32, i32
  }
  func.func @transform_4(%arg0: i32) -> (i32, i32) {
    %c0_i32 = arith.constant 0 : i32
    %c0_i32_0 = arith.constant 0 : i32
    return %c0_i32, %arg0 : i32, i32
  }
  func.func @transform_5(%arg0: i32) -> (i32, i32) {
    %c0_i32 = arith.constant 0 : i32
    %c0_i32_0 = arith.constant 0 : i32
    %c0_i32_1 = arith.constant 0 : i32
    return %c0_i32, %c0_i32_0 : i32, i32
  }
  func.func @transform_6(%arg0: i32) -> (i32, i32) {
    %c0_i32 = arith.constant 0 : i32
    %c0_i32_0 = arith.constant 0 : i32
    %c0_i32_1 = arith.constant 0 : i32
    return %c0_i32, %c0_i32_0 : i32, i32
  }
  func.func @transform_7(%arg0: i32) -> (i32, i32) {
    %c0_i32 = arith.constant 0 : i32
    %c0_i32_0 = arith.constant 0 : i32
    %c0_i32_1 = arith.constant 0 : i32
    return %c0_i32, %c0_i32_0 : i32, i32
  }
  func.func @transform_8(%arg0: i32) -> (i32, i32) {
    %c0_i32 = arith.constant 0 : i32
    %c0_i32_0 = arith.constant 0 : i32
    %c0_i32_1 = arith.constant 0 : i32
    return %c0_i32, %c0_i32_0 : i32, i32
  }
  func.func @transform_9(%arg0: i32) -> (i32, i32) {
    %c0_i32 = arith.constant 0 : i32
    %c0_i32_0 = arith.constant 0 : i32
    return %c0_i32, %arg0 : i32, i32
  }
}

</mosaic_0001>

<llo_original>
// kernel: tpu_custom_call.1
$region0: #{tpu_custom_call.1}
  #allocation0 [shape = 'u32[]', space=smem, size = 0x4, offset = 0x4, fixed_abs, tag = 'smem constant byte address 0x4 - core index']
  #allocation1 [shape = 'u32[144,128]{1,0:T(1,128)}', space=vmem, size = 0x12000, scoped, tag = 'internal scratch']
  #allocation2 [shape = 'f32[1,1]{1,0:T(1,128)S(6)}', space=smem, size = 0x200, scoped, tag = 'scoped memory for tpu_custom_call.1']
  %s0 = inlined_call_operand.vmem [shape: f32[8,16], index: 0, kind: input, shape index: {}]
  %s1 = inlined_call_operand.vmem [shape: f32[1,8], index: 1, kind: input, shape index: {}]
  %s2 = inlined_call_operand.vmem [shape: f32[1,8], index: 2, kind: input, shape index: {}]
  %s3 = inlined_call_operand.vmem [shape: f32[1,8], index: 3, kind: input, shape index: {}]
  %s4 = inlined_call_operand.vmem [shape: f32[1,8], index: 4, kind: input, shape index: {}]
  %s5 = inlined_call_operand.vmem [shape: f32[32,16], index: 5, kind: input, shape index: {}]
  %s6 = inlined_call_operand.vmem [shape: f32[32,1], index: 6, kind: input, shape index: {}]
  %s7 = inlined_call_operand.vmem [shape: f32[1,32], index: 7, kind: input, shape index: {}]
  %s8 = inlined_call_operand.<no memory space> [shape: f32[1,1], index: 8, kind: input, shape index: {}]
  %s9 = inlined_call_operand.hbm [shape: f32[1,8], index: 9, kind: output, shape index: {}]
  %s10 = sld [smem:[#allocation0]]
  $region46: #{tpu_custom_call.1} parent=0
    _
  %s12 = ssub.s32 1, %s10
  %s13 = scalar_select 0, %s12, %s10
  %14 = sst [smem:[#allocation2]] %s8
  $region1: #{tpu_custom_call.1} parent=0
    #allocation3 [shape = 'u8[512]{0}', space=vmem, size = 0x400, scoped, tag = 'output window, operand 0, single buffered']
    #allocation4 [shape = 's32[1]{0}', space=sflag, size = 0x4, scoped, tag = 'scoped memory for tpu_custom_call.1']
    %15 = vsyncpa [#allocation4], 0
    // Predicated region
    $region2: #{tpu_custom_call.1} parent=1 // pred_check
      _
    $region3: #{tpu_custom_call.1} parent=1 // pred_check_branch
      %17 = sbr.rel (0) target = $region5
    $region4: #{tpu_custom_call.1} parent=1 // pred_region
      _
    $region5: #{tpu_custom_call.1} parent=1 // pred_fallthru
      _
    // Predicated region
    $region6: #{tpu_custom_call.1} parent=1 // pred_check
      _
    $region7: #{tpu_custom_call.1} parent=1 // pred_check_branch
      %19 = sbr.rel (0) target = $region9
    $region8: #{tpu_custom_call.1} parent=1 // pred_region
      _
    $region9: #{tpu_custom_call.1} parent=1 // pred_fallthru
      _
    // Predicated region
    $region10: #{tpu_custom_call.1} parent=1 // pred_check
      _
    $region11: #{tpu_custom_call.1} parent=1 // pred_check_branch
      %21 = sbr.rel (0) target = $region13
    $region12: #{tpu_custom_call.1} parent=1 // pred_region
      _
    $region13: #{tpu_custom_call.1} parent=1 // pred_fallthru
      _
    // Predicated region
    $region14: #{tpu_custom_call.1} parent=1 // pred_check
      _
    $region15: #{tpu_custom_call.1} parent=1 // pred_check_branch
      %23 = sbr.rel (0) target = $region17
    $region16: #{tpu_custom_call.1} parent=1 // pred_region
      _
    $region17: #{tpu_custom_call.1} parent=1 // pred_fallthru
      _
    // Predicated region
    $region18: #{tpu_custom_call.1} parent=1 // pred_check
      _
    $region19: #{tpu_custom_call.1} parent=1 // pred_check_branch
      %25 = sbr.rel (0) target = $region21
    $region20: #{tpu_custom_call.1} parent=1 // pred_region
      _
    $region21: #{tpu_custom_call.1} parent=1 // pred_fallthru
      _
    // Predicated region
    $region22: #{tpu_custom_call.1} parent=1 // pred_check
      _
    $region23: #{tpu_custom_call.1} parent=1 // pred_check_branch
      %27 = sbr.rel (0) target = $region25
    $region24: #{tpu_custom_call.1} parent=1 // pred_region
      _
    $region25: #{tpu_custom_call.1} parent=1 // pred_fallthru
      _
    // Predicated region
    $region26: #{tpu_custom_call.1} parent=1 // pred_check
      _
    $region27: #{tpu_custom_call.1} parent=1 // pred_check_branch
      %29 = sbr.rel (0) target = $region29
    $region28: #{tpu_custom_call.1} parent=1 // pred_region
      _
    $region29: #{tpu_custom_call.1} parent=1 // pred_fallthru
      _
    // Predicated region
    $region30: #{tpu_custom_call.1} parent=1 // pred_check
      _
    $region31: #{tpu_custom_call.1} parent=1 // pred_check_branch
      %31 = sbr.rel (0) target = $region33
    $region32: #{tpu_custom_call.1} parent=1 // pred_region
      _
    $region33: #{tpu_custom_call.1} parent=1 // pred_fallthru
      _
    // Predicated region
    $region34: #{tpu_custom_call.1} parent=1 // pred_check
      _
    $region35: #{tpu_custom_call.1} parent=1 // pred_check_branch
      %33 = sbr.rel (0) target = $region37
    $region36: #{tpu_custom_call.1} parent=1 // pred_region
      _
    $region37: #{tpu_custom_call.1} parent=1 // pred_fallthru
      _
    %v34 = vld [vmem:[%s5] sm:$0xff]
    %v35 = vld [vmem:[%s5 + $0x8] sm:$0xff]
    %v36 = vld [vmem:[%s5 + $0x10] sm:$0xff]
    %v37 = vld [vmem:[%s5 + $0x18] sm:$0xff]
    %v38 = vld [vmem:[%s0] sm:$0xff]
    %v39 = vld [vmem:[%s6] sm:$0xff]
    %v40 = vld [vmem:[%s6 + $0x8] sm:$0xff]
    %v41 = vld [vmem:[%s6 + $0x10] sm:$0xff]
    %v42 = vld [vmem:[%s6 + $0x18] sm:$0xff]
    %44 = vset.pattern.permute.xlu0 0
    %45 = vperm.xlu0 %44, %v39
    %v46 = vpop.permute.xlu0 %45
    %49 = vset.pattern.permute.xlu0 0
    %50 = vperm.xlu0 %49, %v40
    %v51 = vpop.permute.xlu0 %50
    %54 = vset.pattern.permute.xlu0 0
    %55 = vperm.xlu0 %54, %v41
    %v56 = vpop.permute.xlu0 %55
    %59 = vset.pattern.permute.xlu0 0
    %60 = vperm.xlu0 %59, %v42
    %v61 = vpop.permute.xlu0 %60
    %vm63 = vcmask 130048
    %v65 = vsel %vm63, %v34, 0
    %v68 = vsel %vm63, %v35, 0
    %v71 = vsel %vm63, %v36, 0
    %v74 = vsel %vm63, %v37, 0
    %v77 = vsel %vm63, %v38, 0
    %79 = vmatprep.subr.mxu0 0.0
    %80 = vmatpush1.xpose.msra.mxu0 %v77
    %81 = vmatprep.subr.mxu0 0.0
    %82 = vmatpush1.xpose.msra.mxu0 0.0
    %83 = vmatprep.subr.mxu0 0.0
    %84 = vmatpush1.xpose.msra.mxu0 0.0
    %85 = vmatprep.subr.mxu0 0.0
    %86 = vmatpush1.xpose.msra.mxu0 0.0
    %87 = vmatprep.subr.mxu0 0.0
    %88 = vmatpush1.xpose.msra.mxu0 0.0
    %89 = vmatprep.subr.mxu0 0.0
    %90 = vmatpush1.xpose.msra.mxu0 0.0
    %91 = vmatprep.subr.mxu0 0.0
    %92 = vmatpush1.xpose.msra.mxu0 0.0
    %93 = vmatprep.subr.mxu0 0.0
    %94 = vmatpush1.xpose.msra.mxu0 0.0
    %95 = vmatprep.subr.mxu0 0.0
    %96 = vmatpush1.xpose.msra.mxu0 0.0
    %97 = vmatprep.subr.mxu0 0.0
    %98 = vmatpush1.xpose.msra.mxu0 0.0
    %99 = vmatprep.subr.mxu0 0.0
    %100 = vmatpush1.xpose.msra.mxu0 0.0
    %101 = vmatprep.subr.mxu0 0.0
    %102 = vmatpush1.xpose.msra.mxu0 0.0
    %103 = vmatprep.subr.mxu0 0.0
    %104 = vmatpush1.xpose.msra.mxu0 0.0
    %105 = vmatprep.subr.mxu0 0.0
    %106 = vmatpush1.xpose.msra.mxu0 0.0
    %107 = vmatprep.subr.mxu0 0.0
    %108 = vmatpush1.xpose.msra.mxu0 0.0
    %109 = vmatprep.subr.mxu0 0.0
    %110 = vmatpush1.xpose.msra.mxu0 0.0
    %111 = vmatprep.subr.mxu0 0.0
    %112 = vmatpush1.xpose.msra.mxu0 0.0
    %113 = vmatprep.subr.mxu0 0.0
    %114 = vmatpush1.xpose.msra.mxu0 0.0
    %115 = vmatprep.subr.mxu0 0.0
    %116 = vmatpush1.xpose.msra.mxu0 0.0
    %117 = vmatprep.subr.mxu0 0.0
    %118 = vmatpush1.xpose.msra.mxu0 0.0
    %119 = vmatprep.subr.mxu0 0.0
    %120 = vmatpush1.xpose.msra.mxu0 0.0
    %121 = vmatprep.subr.mxu0 0.0
    %122 = vmatpush1.xpose.msra.mxu0 0.0
    %123 = vmatprep.subr.mxu0 0.0
    %124 = vmatpush1.xpose.msra.mxu0 0.0
    %125 = vmatprep.subr.mxu0 0.0
    %126 = vmatpush1.xpose.msra.mxu0 0.0
    %127 = vmatprep.subr.mxu0 0.0
    %128 = vmatpush1.xpose.msra.mxu0 0.0
    %129 = vmatprep.subr.mxu0 0.0
    %130 = vmatpush1.xpose.msra.mxu0 0.0
    %131 = vmatprep.subr.mxu0 0.0
    %132 = vmatpush1.xpose.msra.mxu0 0.0
    %133 = vmatprep.subr.mxu0 0.0
    %134 = vmatpush1.xpose.msra.mxu0 0.0
    %135 = vmatprep.subr.mxu0 0.0
    %136 = vmatpush1.xpose.msra.mxu0 0.0
    %137 = vmatprep.subr.mxu0 0.0
    %138 = vmatpush1.xpose.msra.mxu0 0.0
    %139 = vmatprep.subr.mxu0 0.0
    %140 = vmatpush1.xpose.msra.mxu0 0.0
    %141 = vmatprep.subr.mxu0 0.0
    %142 = vmatpush1.xpose.msra.mxu0 0.0
    %143 = vmatprep.mubr.f32.mxu0 0.0
    %144 = vmatmul.mubr.f32.gmra.mrb[0].mxu0 %v65
    %v145 = vpop.f32.mrb[0].mxu0
    %v146 = vadd.f32 %v46, %v145
    %v147 = vpop.f32.mrb[0].mxu0
    %148 = vmatprep.mubr.f32.mxu0 0.0
    %149 = vmatmul.mubr.f32.gmra.mrb[0].mxu0 %v68
    %v150 = vpop.f32.mrb[0].mxu0
    %v151 = vadd.f32 %v51, %v150
    %v152 = vpop.f32.mrb[0].mxu0
    %153 = vmatprep.mubr.f32.mxu0 0.0
    %154 = vmatmul.mubr.f32.gmra.mrb[0].mxu0 %v71
    %v155 = vpop.f32.mrb[0].mxu0
    %v156 = vadd.f32 %v56, %v155
    %v157 = vpop.f32.mrb[0].mxu0
    %158 = vmatprep.mubr.f32.mxu0 0.0
    %159 = vmatmul.mubr.f32.gmra.mrb[0].mxu0 %v74
    %v160 = vpop.f32.mrb[0].mxu0
    %v161 = vadd.f32 %v61, %v160
    %v162 = vpop.f32.mrb[0].mxu0
    %163 = vdwg.mxu0
    %v164 = vmax.f32 %v146, 0.0
    %v165 = vmax.f32 %v151, 0.0
    %v166 = vmax.f32 %v156, 0.0
    %v167 = vmax.f32 %v161, 0.0
    %v168 = vld [vmem:[%s7] sm:$0x1]
    %s169 = sld [smem:[#allocation2]]
    %v170 = vstv %s169
    %vm171 = vcmask 261120
    %v173 = vsel %vm171, %v168, 0
    %175 = vmatprep.subr.mxu0 0.0
    %176 = vmatpush1.msra.mxu0 %v164
    %177 = vmatprep.subr.mxu0 0.0
    %178 = vmatpush1.msra.mxu0 %v165
    %179 = vmatprep.subr.mxu0 0.0
    %180 = vmatpush1.msra.mxu0 %v166
    %181 = vmatprep.subr.mxu0 0.0
    %182 = vmatpush1.msra.mxu0 %v167
    %183 = vmatprep.subr.mxu0 0.0
    %184 = vmatpush1.msra.mxu0 0.0
    %185 = vmatprep.subr.mxu0 0.0
    %186 = vmatpush1.msra.mxu0 0.0
    %187 = vmatprep.subr.mxu0 0.0
    %188 = vmatpush1.msra.mxu0 0.0
    %189 = vmatprep.subr.mxu0 0.0
    %190 = vmatpush1.msra.mxu0 0.0
    %191 = vmatprep.subr.mxu0 0.0
    %192 = vmatpush1.msra.mxu0 0.0
    %193 = vmatprep.subr.mxu0 0.0
    %194 = vmatpush1.msra.mxu0 0.0
    %195 = vmatprep.subr.mxu0 0.0
    %196 = vmatpush1.msra.mxu0 0.0
    %197 = vmatprep.subr.mxu0 0.0
    %198 = vmatpush1.msra.mxu0 0.0
    %199 = vmatprep.subr.mxu0 0.0
    %200 = vmatpush1.msra.mxu0 0.0
    %201 = vmatprep.subr.mxu0 0.0
    %202 = vmatpush1.msra.mxu0 0.0
    %203 = vmatprep.subr.mxu0 0.0
    %204 = vmatpush1.msra.mxu0 0.0
    %205 = vmatprep.subr.mxu0 0.0
    %206 = vmatpush1.msra.mxu0 0.0
    %207 = vmatprep.subr.mxu0 0.0
    %208 = vmatpush1.msra.mxu0 0.0
    %209 = vmatprep.subr.mxu0 0.0
    %210 = vmatpush1.msra.mxu0 0.0
    %211 = vmatprep.subr.mxu0 0.0
    %212 = vmatpush1.msra.mxu0 0.0
    %213 = vmatprep.subr.mxu0 0.0
    %214 = vmatpush1.msra.mxu0 0.0
    %215 = vmatprep.subr.mxu0 0.0
    %216 = vmatpush1.msra.mxu0 0.0
    %217 = vmatprep.subr.mxu0 0.0
    %218 = vmatpush1.msra.mxu0 0.0
    %219 = vmatprep.subr.mxu0 0.0
    %220 = vmatpush1.msra.mxu0 0.0
    %221 = vmatprep.subr.mxu0 0.0
    %222 = vmatpush1.msra.mxu0 0.0
    %223 = vmatprep.subr.mxu0 0.0
    %224 = vmatpush1.msra.mxu0 0.0
    %225 = vmatprep.subr.mxu0 0.0
    %226 = vmatpush1.msra.mxu0 0.0
    %227 = vmatprep.subr.mxu0 0.0
    %228 = vmatpush1.msra.mxu0 0.0
    %229 = vmatprep.subr.mxu0 0.0
    %230 = vmatpush1.msra.mxu0 0.0
    %231 = vmatprep.subr.mxu0 0.0
    %232 = vmatpush1.msra.mxu0 0.0
    %233 = vmatprep.subr.mxu0 0.0
    %234 = vmatpush1.msra.mxu0 0.0
    %235 = vmatprep.subr.mxu0 0.0
    %236 = vmatpush1.msra.mxu0 0.0
    %237 = vmatprep.subr.mxu0 0.0
    %238 = vmatpush1.msra.mxu0 0.0
    %239 = vmatprep.mubr.f32.mxu0 0.0
    %240 = vmatmul.mubr.f32.gmra.mrb[0].mxu0 %v173
    %v241 = vpop.f32.mrb[0].mxu0
    %v242 = vadd.f32 %v170, %v241
    %v243 = vpop.f32.mrb[0].mxu0
    %244 = vdwg.mxu0
    %v245 = vld [vmem:[%s1] sm:$0x1]
    %v246 = vld [vmem:[%s2] sm:$0x1]
    %v247 = vadd.f32 %v245, %v246
    %v248 = vld [vmem:[%s4] sm:$0x1]
    %v249 = vld [vmem:[%s3] sm:$0x1]
    %v250 = vmul.f32 %v248, %v249
    %v251 = vmin.f32 %v247, %v250
    %v252 = vmax.f32 %v242, 0.0
    %v253 = vmin.f32 %v252, %v251
    %s254 = smul.u32 0, 8
    %v255 = vlaneseq
    %v256 = vand.u32 %v255, 127
    %v257 = vstv %s254
    %v258 = vadd.s32 %v257, %v256
    %vm259 = vcmp.lt.s32.totalorder %v258, 8
    %vm260 = vcmp.gt.f32.partialorder %v247, 1e-05
    %vm261 = vmand %vm259, %vm260
    %v262 = vsel %vm261, %v253, 0.0
    %vm263 = vcmask 57344
    %264 = vst.msk [vmem:[#allocation3] sm:$0x1] %vm263, %v262
    // Predicated region
    $region38: #{tpu_custom_call.1} parent=1 // pred_check
      _
    $region39: #{tpu_custom_call.1} parent=1 // pred_check_branch
      %266 = sbr.rel (0) target = $region41
    $region40: #{tpu_custom_call.1} parent=1 // pred_region
      %s268 = ssub.s32 16, 16
      %269 = vsyncadd [#allocation4], %s268
      %s271 = sshll.u32 [#allocation3], 4
      %s272 = int_to_ptr.vmem [resolvable:$true] %s271
      %274 = dma.vmem_to_hbm [thread:$0]  %s272, 16, %s9, [#allocation4]
    $region41: #{tpu_custom_call.1} parent=1 // pred_fallthru
      _
    // Predicated region
    $region42: #{tpu_custom_call.1} parent=1 // pred_check
      _
    $region43: #{tpu_custom_call.1} parent=1 // pred_check_branch
      %276 = sbr.rel (0) target = $region45
    $region44: #{tpu_custom_call.1} parent=1 // pred_region
      %277 = dma.done [#allocation4], 16
    $region45: #{tpu_custom_call.1} parent=1 // pred_fallthru
      _
    %278 = vsyncpa [#allocation4], 1

</llo_original>
